<compile_context>
chip_gen: v7x
topology: tpu7x:2x2x1
jax: 0.10.0
libtpu: 0.0.40
codegen_flags: <defaults>
</compile_context>

<pallas_src>
import functools
import math

import jax
import jax.numpy as jnp
from jax import lax
from jax.experimental import pallas as pl
from jax.experimental.pallas import tpu as pltpu


def _down_conv_kernel(s_ref, halo_ref, w_ref, b_ref, o_ref, *, T, Wo, Cout):
    # s_ref:    (1, T,     Wo+1, 4C)  space-to-depth rows [i*T, i*T + T)
    # halo_ref: (1, 1,     Wo+1, 4C)  space-to-depth row   i*T + T   (bottom halo)
    # w_ref:    (16C, Cout)           fused conv weights
    # b_ref:    (1, Cout)             bias
    # o_ref:    (1, T*Wo, Cout)       output tokens for this row tile
    s_top = s_ref[0]                                   # (T, Wo+1, 4C)
    halo = halo_ref[0]                                 # (1, Wo+1, 4C)
    if T > 1:
        s_bot = jnp.concatenate([s_top[1:], halo], axis=0)   # rows i*T+1 .. i*T+T
    else:
        s_bot = halo
    Cg = s_top.shape[-1]

    def col_taps(s):
        # two column-shifted contiguous patches, flattened to (T*Wo, 4C)
        return (s[:, :Wo, :].reshape(T * Wo, Cg),
                s[:, 1:Wo + 1, :].reshape(T * Wo, Cg))

    p00, p01 = col_taps(s_top)      # taps (dh=0, dw=0/1)
    p10, p11 = col_taps(s_bot)      # taps (dh=1, dw=0/1)
    patches = jnp.concatenate([p00, p01, p10, p11], axis=-1)   # (T*Wo, 16C)

    acc = jnp.dot(patches, w_ref[...], preferred_element_type=jnp.float32)
    o_ref[0] = (acc + b_ref[...].astype(jnp.float32)).astype(o_ref.dtype)


def _choose_tile_rows(Ho, Wo, Cg, itemsize, vmem_budget=512 * 1024):
    """Largest divisor T of Ho s.t. the input row-block fits the budget and the
    output block stays sublane-aligned (T*Wo % 8 == 0 unless T == Ho)."""
    divisors = [t for t in range(1, Ho + 1) if Ho % t == 0]
    valid = [t for t in divisors if t == Ho or (t * Wo) % 8 == 0]
    if not valid:
        return Ho
    fitting = [t for t in valid
               if (t + 1) * (Wo + 1) * Cg * itemsize <= vmem_budget]
    return max(fitting) if fitting else min(valid)


def patch_down_sample(x, weight, bias, *, tile_rows=None, compute_dtype=None):
    """x: (B, L, C); weight: (Cout, Cin, 3, 3) [torch OIHW]; bias: (Cout,)."""
    B, L, C = x.shape
    H = W = round(math.sqrt(L))
    assert H * W == L, "L must be a perfect square"
    Cout, Cin, KH, KW = weight.shape
    assert (Cin, KH, KW) == (C, 3, 3)

    # PyTorch Conv2d(k=3, s=2, p=1) output size.
    Ho = (H - 1) // 2 + 1
    Wo = (W - 1) // 2 + 1
    Cg = 4 * C

    # ---- wrapper-side zero-pad + space-to-depth (one fused XLA pass) ----------
    # S[b, bh, bw, ph*2C + pw*C + c] = P[b, 2*bh+ph, 2*bw+pw, c], P = zero-padded image.
    Hp, Wp = 2 * (Ho + 1), 2 * (Wo + 1)
    x_img = x.reshape(B, H, W, C)
    x_pad = jnp.pad(x_img, ((0, 0), (1, Hp - 1 - H), (1, Wp - 1 - W), (0, 0)))
    s2d = (x_pad.reshape(B, Ho + 1, 2, Wo + 1, 2, C)
                .transpose(0, 1, 3, 2, 4, 5)
                .reshape(B, Ho + 1, Wo + 1, Cg))

    # ---- weights: OIHW -> fused (16C, Cout) matrix matching the patch layout --
    # Row index = (2*dh + dw)*4C + ph*2C + pw*C + c, value = w[kh=2*dh+ph, kw=2*dw+pw]
    # (rows with kh==3 or kw==3 are zero -> those taps don't exist in the 3x3 kernel).
    w_hwio = jnp.transpose(weight, (2, 3, 1, 0))                    # (3,3,Ci,Co)
    w_pad = jnp.pad(w_hwio, ((0, 1), (0, 1), (0, 0), (0, 0)))       # (4,4,Ci,Co)
    w_fused = (w_pad.reshape(2, 2, 2, 2, C, Cout)                   # (dh,ph,dw,pw,Ci,Co)
                    .transpose(0, 2, 1, 3, 4, 5)                    # (dh,dw,ph,pw,Ci,Co)
                    .reshape(4 * Cg, Cout))
    b2d = bias.reshape(1, Cout)

    if compute_dtype is not None:
        s2d = s2d.astype(compute_dtype)
        w_fused = w_fused.astype(compute_dtype)
    else:
        w_fused = w_fused.astype(x.dtype)

    # ---- row tiling ------------------------------------------------------------
    if tile_rows is None:
        T = _choose_tile_rows(Ho, Wo, Cg, s2d.dtype.itemsize)
    else:
        T = tile_rows
    assert Ho % T == 0 and (T == Ho or (T * Wo) % 8 == 0), "bad tile_rows"
    n_tiles = Ho // T

    kernel = functools.partial(_down_conv_kernel, T=T, Wo=Wo, Cout=Cout)

    flops = 2 * B * Ho * Wo * 9 * C * Cout
    bytes_accessed = (s2d.size * s2d.dtype.itemsize
                      + w_fused.size * w_fused.dtype.itemsize
                      + b2d.size * b2d.dtype.itemsize
                      + B * Ho * Wo * Cout * x.dtype.itemsize)

    out = pl.pallas_call(
        kernel,
        out_shape=jax.ShapeDtypeStruct((B, Ho * Wo, Cout), x.dtype),
        grid_spec=pltpu.PrefetchScalarGridSpec(
            num_scalar_prefetch=0,
            grid=(B, n_tiles),
            in_specs=[
                # main row tile: s2d rows [i*T, i*T + T)
                pl.BlockSpec((1, T, Wo + 1, Cg), lambda b, i: (b, i, 0, 0)),
                # one-row bottom halo: s2d row i*T + T (row-block size 1 => element index)
                pl.BlockSpec((1, 1, Wo + 1, Cg), lambda b, i: (b, (i + 1) * T, 0, 0)),
                pl.BlockSpec((4 * Cg, Cout), lambda b, i: (0, 0)),
                pl.BlockSpec((1, Cout), lambda b, i: (0, 0)),
            ],
            out_specs=pl.BlockSpec((1, T * Wo, Cout), lambda b, i: (b, i, 0)),
        ),
        compiler_params=pltpu.CompilerParams(
            dimension_semantics=("parallel", "parallel"),
            vmem_limit_bytes=32 * 1024 * 1024,
        ),
        cost_estimate=pl.CostEstimate(
            flops=flops, transcendentals=0, bytes_accessed=bytes_accessed),
    )(s2d, s2d, w_fused, b2d)
    return out


def _reference(x, weight, bias):
    """Plain-JAX reference mirroring the PyTorch forward (NCHW conv)."""
    B, L, C = x.shape
    H = W = round(math.sqrt(L))
    x_nchw = jnp.transpose(x.reshape(B, H, W, C), (0, 3, 1, 2))
    y = lax.conv_general_dilated(
        x_nchw.astype(jnp.float32),
        weight.astype(jnp.float32),
        window_strides=(2, 2),
        padding=((1, 1), (1, 1)),
        dimension_numbers=("NCHW", "OIHW", "NCHW"),
    ) + bias.reshape(1, -1, 1, 1)
    B_, Co, Ho, Wo = y.shape
    return jnp.transpose(y, (0, 2, 3, 1)).reshape(B_, Ho * Wo, Co)


if __name__ == "__main__":
    B, C, H, W = 2, 4, 16, 16
    L = H * W

    key = jax.random.PRNGKey(0)
    kx, kw, kb = jax.random.split(key, 3)
    x = jax.random.normal(kx, (B, L, C), dtype=jnp.float32)

    # Deterministic Conv2d(dim, dim, 3, 2, 1) parameters (torch layout OIHW).
    fan_in = C * 3 * 3
    bound = 1.0 / math.sqrt(fan_in)
    weight = jax.random.uniform(kw, (C, C, 3, 3), jnp.float32, -bound, bound)
    bias = jax.random.uniform(kb, (C,), jnp.float32, -bound, bound)

    ref = _reference(x, weight, bias)

    # Auto tile choice (single row tile at this tiny size).
    out_auto = jax.block_until_ready(patch_down_sample(x, weight, bias))
    # Explicit row tiling (2 row tiles) to exercise the halo path.
    out_tiled = jax.block_until_ready(patch_down_sample(x, weight, bias, tile_rows=4))

    assert out_auto.shape == ref.shape == (B, (H // 2) * (W // 2), C)
    assert jnp.allclose(out_auto, ref, atol=1e-4, rtol=1e-4), "mismatch (auto tiling)"
    assert jnp.allclose(out_tiled, ref, atol=1e-4, rtol=1e-4), "mismatch (row tiled)"

    print("KERNEL_OK")
</pallas_src>

<mosaic_0001>
module attributes {stable_mosaic.version = 11 : i64} {
  func.func @_down_conv_kernel(%arg0: i32, %arg1: i32, %arg2: memref<1x8x9x16xf32, #tpu.memory_space<vmem>>, %arg3: memref<1x1x9x16xf32, #tpu.memory_space<vmem>>, %arg4: memref<64x4xf32, #tpu.memory_space<vmem>>, %arg5: memref<1x4xf32, #tpu.memory_space<vmem>>, %arg6: memref<1x64x4xf32, #tpu.memory_space<vmem>>) attributes {dimension_semantics = [#tpu.dimension_semantics<parallel>, #tpu.dimension_semantics<parallel>], iteration_bounds = array<i64: 2, 1>, scalar_prefetch = 0 : i64, scratch_operands = 0 : i64, tpu.core_type = #tpu.core_type<tc>, window_params = [{transform_indices = @transform_0, window_bounds = array<i64: 1, 8, 9, 16>}, {transform_indices = @transform_1, window_bounds = array<i64: 1, 1, 9, 16>}, {pipeline_mode = #tpu.pipeline_mode<synchronous>, transform_indices = @transform_2, window_bounds = array<i64: 64, 4>}, {pipeline_mode = #tpu.pipeline_mode<synchronous>, transform_indices = @transform_3, window_bounds = array<i64: 1, 4>}, {transform_indices = @transform_4, window_bounds = array<i64: 1, 64, 4>}]} {
    %c0 = arith.constant 0 : index
    %c0_0 = arith.constant 0 : index
    %c0_1 = arith.constant 0 : index
    %c0_2 = arith.constant 0 : index
    %0 = vector.load %arg2[%c0, %c0_0, %c0_1, %c0_2] : memref<1x8x9x16xf32, #tpu.memory_space<vmem>>, vector<1x8x9x16xf32>
    %1 = vector.shape_cast %0 : vector<1x8x9x16xf32> to vector<8x9x16xf32>
    %c0_3 = arith.constant 0 : index
    %c0_4 = arith.constant 0 : index
    %c0_5 = arith.constant 0 : index
    %c0_6 = arith.constant 0 : index
    %2 = vector.load %arg3[%c0_3, %c0_4, %c0_5, %c0_6] : memref<1x1x9x16xf32, #tpu.memory_space<vmem>>, vector<1x1x9x16xf32>
    %3 = vector.shape_cast %2 : vector<1x1x9x16xf32> to vector<1x9x16xf32>
    %4 = vector.extract_strided_slice %1 {offsets = [1, 0, 0], sizes = [7, 9, 16], strides = [1, 1, 1]} : vector<8x9x16xf32> to vector<7x9x16xf32>
    %5 = tpu.concatenate %4, %3 in 0 : vector<7x9x16xf32>, vector<1x9x16xf32> -> vector<8x9x16xf32>
    %6 = vector.extract_strided_slice %1 {offsets = [0, 0, 0], sizes = [8, 8, 16], strides = [1, 1, 1]} : vector<8x9x16xf32> to vector<8x8x16xf32>
    %7 = vector.shape_cast %6 : vector<8x8x16xf32> to vector<64x16xf32>
    %8 = vector.extract_strided_slice %1 {offsets = [0, 1, 0], sizes = [8, 8, 16], strides = [1, 1, 1]} : vector<8x9x16xf32> to vector<8x8x16xf32>
    %9 = vector.shape_cast %8 : vector<8x8x16xf32> to vector<64x16xf32>
    %10 = vector.extract_strided_slice %5 {offsets = [0, 0, 0], sizes = [8, 8, 16], strides = [1, 1, 1]} : vector<8x9x16xf32> to vector<8x8x16xf32>
    %11 = vector.shape_cast %10 : vector<8x8x16xf32> to vector<64x16xf32>
    %12 = vector.extract_strided_slice %5 {offsets = [0, 1, 0], sizes = [8, 8, 16], strides = [1, 1, 1]} : vector<8x9x16xf32> to vector<8x8x16xf32>
    %13 = vector.shape_cast %12 : vector<8x8x16xf32> to vector<64x16xf32>
    %14 = tpu.concatenate %7, %9, %11, %13 in 1 : vector<64x16xf32>, vector<64x16xf32>, vector<64x16xf32>, vector<64x16xf32> -> vector<64x64xf32>
    %c0_7 = arith.constant 0 : index
    %c0_8 = arith.constant 0 : index
    %15 = vector.load %arg4[%c0_7, %c0_8] : memref<64x4xf32, #tpu.memory_space<vmem>>, vector<64x4xf32>
    %cst = arith.constant dense<0.000000e+00> : vector<64x4xf32>
    %16 = tpu.matmul %14, %15, %cst {dimension_numbers = #tpu.dot_dimension_numbers<[1], [0], [0], [1], [0, 0, 1, 1], [], []>} : vector<64x64xf32>, vector<64x4xf32>, vector<64x4xf32> -> vector<64x4xf32>
    %c0_9 = arith.constant 0 : index
    %c0_10 = arith.constant 0 : index
    %17 = vector.load %arg5[%c0_9, %c0_10] : memref<1x4xf32, #tpu.memory_space<vmem>>, vector<1x4xf32>
    %18 = vector.broadcast %17 : vector<1x4xf32> to vector<64x4xf32>
    %19 = arith.addf %16, %18 : vector<64x4xf32>
    %c0_11 = arith.constant 0 : index
    %c0_12 = arith.constant 0 : index
    %c0_13 = arith.constant 0 : index
    %20 = vector.load %arg6[%c0_11, %c0_12, %c0_13] : memref<1x64x4xf32, #tpu.memory_space<vmem>>, vector<1x64x4xf32>
    %21 = vector.shape_cast %20 : vector<1x64x4xf32> to vector<64x4xf32>
    %22 = vector.shape_cast %19 : vector<64x4xf32> to vector<1x64x4xf32>
    tpu.vector_store %arg6[%c0_11, %c0_12, %c0_13], %22 {strides = array<i32>} : memref<1x64x4xf32, #tpu.memory_space<vmem>>, vector<1x64x4xf32>,
    return
  }
  func.func @transform_0(%arg0: i32, %arg1: i32) -> (i32, i32, i32, i32) {
    %c0_i32 = arith.constant 0 : i32
    %c0_i32_0 = arith.constant 0 : i32
    %c0_i32_1 = arith.constant 0 : i32
    return %arg0, %arg1, %c0_i32, %c0_i32_0 : i32, i32, i32, i32
  }
  func.func @transform_1(%arg0: i32, %arg1: i32) -> (i32, i32, i32, i32) {
    %c1_i32 = arith.constant 1 : i32
    %0 = arith.addi %arg1, %c1_i32 : i32
    %c8_i32 = arith.constant 8 : i32
    %1 = arith.muli %0, %c8_i32 : i32
    %c0_i32 = arith.constant 0 : i32
    %c0_i32_0 = arith.constant 0 : i32
    %c0_i32_1 = arith.constant 0 : i32
    return %arg0, %1, %c0_i32, %c0_i32_0 : i32, i32, i32, i32
  }
  func.func @transform_2(%arg0: i32, %arg1: i32) -> (i32, i32) {
    %c0_i32 = arith.constant 0 : i32
    %c0_i32_0 = arith.constant 0 : i32
    %c0_i32_1 = arith.constant 0 : i32
    return %c0_i32, %c0_i32_0 : i32, i32
  }
  func.func @transform_3(%arg0: i32, %arg1: i32) -> (i32, i32) {
    %c0_i32 = arith.constant 0 : i32
    %c0_i32_0 = arith.constant 0 : i32
    %c0_i32_1 = arith.constant 0 : i32
    return %c0_i32, %c0_i32_0 : i32, i32
  }
  func.func @transform_4(%arg0: i32, %arg1: i32) -> (i32, i32, i32) {
    %c0_i32 = arith.constant 0 : i32
    %c0_i32_0 = arith.constant 0 : i32
    return %arg0, %arg1, %c0_i32 : i32, i32, i32
  }
}

</mosaic_0001>

<llo_original>
// kernel: tpu_custom_call.1
$region0: #{tpu_custom_call.1}
  #allocation0 [shape = 'u32[]', space=smem, size = 0x4, offset = 0x4, fixed_abs, tag = 'smem constant byte address 0x4 - core index']
  #allocation1 [shape = 'u32[144,128]{1,0:T(1,128)}', space=vmem, size = 0x12000, scoped, tag = 'internal scratch']
  %s0 = inlined_call_operand.vmem [shape: f32[2,9,9,16], index: 0, kind: input, shape index: {}]
  %s1 = inlined_call_operand.vmem [shape: f32[2,9,9,16], index: 1, kind: input, shape index: {}]
  %s2 = inlined_call_operand.vmem [shape: f32[64,4], index: 2, kind: input, shape index: {}]
  %s3 = inlined_call_operand.vmem [shape: f32[1,4], index: 3, kind: input, shape index: {}]
  %s4 = inlined_call_operand.vmem [shape: f32[2,64,4], index: 4, kind: output, shape index: {}]
  %s5 = sld [smem:[#allocation0]]
  $region49: #{tpu_custom_call.1} parent=0
    _
  %s7 = ssub.s32 1, %s5
  %s8 = scalar_select 0, %s7, %s5
  loop: start=0, step=1, limit=4
  $region2: #{tpu_custom_call.1} parent=0 // loop_pre_header
    _
  $region3: #{tpu_custom_call.1} parent=0 // loop_header
    %s10 = sphi 0, %s14
    %p11 = scmp.ge.s32.totalorder %s10, 4
    %s17 = sphi 0, %s29
    %s18 = sphi 0, %s25
    %s19 = sphi 0, %s17
    %s20 = sphi 0, %s18
    %s21 = sphi 0, %s19
    %s22 = sphi 0, %s20
    %s34 = sphi 0, %s36
    %s37 = sphi 0, %s34
    %s38 = sphi 0, %s37
    %s54 = sphi 0, %s38
    %s66 = sphi 0, %s68
    %s69 = sphi 0, %s66
    %s70 = sphi 0, %s69
    %s86 = sphi 0, %s70
    %s90 = sphi 0, %s90
    %s92 = sphi 0, %s90
    %s93 = sphi 0, %s92
    %s107 = sphi 0, %s93
    %s111 = sphi 0, %s111
    %s113 = sphi 0, %s111
    %s114 = sphi 0, %s113
    %s128 = sphi 0, %s114
    %s136 = sphi 0, %s138
    %s139 = sphi 0, %s136
    %s140 = sphi 0, %s139
    %s156 = sphi 0, %s140
  $region4: #{tpu_custom_call.1} parent=0 // loop_header_branch
    %13 = sbr.rel (%p11) target = $region8
  $region5: #{tpu_custom_call.1} parent=0 // loop_body
    %s15 = ssub.s32 %s10, 1
    %s16 = ssub.s32 %s10, 2
    %s23 = sadd.s32 1, %s18
    %p24 = scmp.ge.s32.totalorder %s23, 1
    %s25 = scalar_select %p24, 0, %s23
    %s26 = sadd.s32 1, %s17
    %s27 = scalar_select %p24, %s26, %s17
    %p28 = scmp.ge.s32.totalorder %s27, 2
    %s29 = scalar_select %p28, 0, %s27
    %s30 = ssub.s32 %s17, %s29
    %s31 = ssub.s32 %s18, %s25
    %s32 = sor.u32 %s30, %s31
    %p33 = scmp.eq.s32.totalorder %s32, 0
    %s35 = sadd.s32 %s34, 1
    %s36 = scalar_select %p33, %s34, %s35
    %p39 = pneg %p33
    %p40 = scmp.eq.s32.totalorder %s10, 1
    %p41 = por %p39, %p40
    %p42 = scmp.ne.s32.totalorder %s34, %s37
    %p43 = scmp.eq.s32.totalorder %s10, 0
    %p44 = por %p42, %p43
    %p45 = scmp.ne.s32.totalorder %s34, %s37
    %p46 = scmp.eq.s32.totalorder %s15, 1
    %p47 = por %p45, %p46
    %p48 = scmp.ne.s32.totalorder %s37, %s38
    %p49 = scmp.eq.s32.totalorder %s15, 0
    %p50 = por %p48, %p49
    %p51 = scmp.ne.s32.totalorder %s37, %s38
    %p52 = scmp.eq.s32.totalorder %s16, 1
    %p53 = por %p51, %p52
    %p55 = scmp.ne.s32.totalorder %s38, %s54
    %p56 = scmp.eq.s32.totalorder %s16, 0
    %p57 = por %p55, %p56
    %s58 = sadd.s32 %s18, 1
    %s59 = smul.u32 %s58, 8
    %s60 = sadd.s32 %s25, 1
    %s61 = smul.u32 %s60, 8
    %s62 = ssub.s32 %s17, %s29
    %s63 = ssub.s32 %s59, %s61
    %s64 = sor.u32 %s62, %s63
    %p65 = scmp.eq.s32.totalorder %s64, 0
    %s67 = sadd.s32 %s66, 1
    %s68 = scalar_select %p65, %s66, %s67
    %p71 = pneg %p65
    %p72 = scmp.eq.s32.totalorder %s10, 1
    %p73 = por %p71, %p72
    %p74 = scmp.ne.s32.totalorder %s66, %s69
    %p75 = scmp.eq.s32.totalorder %s10, 0
    %p76 = por %p74, %p75
    %p77 = scmp.ne.s32.totalorder %s66, %s69
    %p78 = scmp.eq.s32.totalorder %s15, 1
    %p79 = por %p77, %p78
    %p80 = scmp.ne.s32.totalorder %s69, %s70
    %p81 = scmp.eq.s32.totalorder %s15, 0
    %p82 = por %p80, %p81
    %p83 = scmp.ne.s32.totalorder %s69, %s70
    %p84 = scmp.eq.s32.totalorder %s16, 1
    %p85 = por %p83, %p84
    %p87 = scmp.ne.s32.totalorder %s70, %s86
    %p88 = scmp.eq.s32.totalorder %s16, 0
    %p89 = por %p87, %p88
    %s91 = sadd.s32 %s90, 1
    %p94 = scmp.eq.s32.totalorder %s10, 1
    %p95 = scmp.ne.s32.totalorder %s90, %s92
    %p96 = scmp.eq.s32.totalorder %s10, 0
    %p97 = por %p95, %p96
    %p98 = scmp.ne.s32.totalorder %s90, %s92
    %p99 = scmp.eq.s32.totalorder %s15, 1
    %p100 = por %p98, %p99
    %p101 = scmp.ne.s32.totalorder %s92, %s93
    %p102 = scmp.eq.s32.totalorder %s15, 0
    %p103 = por %p101, %p102
    %p104 = scmp.ne.s32.totalorder %s92, %s93
    %p105 = scmp.eq.s32.totalorder %s16, 1
    %p106 = por %p104, %p105
    %p108 = scmp.ne.s32.totalorder %s93, %s107
    %p109 = scmp.eq.s32.totalorder %s16, 0
    %p110 = por %p108, %p109
    %s112 = sadd.s32 %s111, 1
    %p115 = scmp.eq.s32.totalorder %s10, 1
    %p116 = scmp.ne.s32.totalorder %s111, %s113
    %p117 = scmp.eq.s32.totalorder %s10, 0
    %p118 = por %p116, %p117
    %p119 = scmp.ne.s32.totalorder %s111, %s113
    %p120 = scmp.eq.s32.totalorder %s15, 1
    %p121 = por %p119, %p120
    %p122 = scmp.ne.s32.totalorder %s113, %s114
    %p123 = scmp.eq.s32.totalorder %s15, 0
    %p124 = por %p122, %p123
    %p125 = scmp.ne.s32.totalorder %s113, %s114
    %p126 = scmp.eq.s32.totalorder %s16, 1
    %p127 = por %p125, %p126
    %p129 = scmp.ne.s32.totalorder %s114, %s128
    %p130 = scmp.eq.s32.totalorder %s16, 0
    %p131 = por %p129, %p130
    %s132 = ssub.s32 %s17, %s29
    %s133 = ssub.s32 %s18, %s25
    %s134 = sor.u32 %s132, %s133
    %p135 = scmp.eq.s32.totalorder %s134, 0
    %s137 = sadd.s32 %s136, 1
    %s138 = scalar_select %p135, %s136, %s137
    %p141 = pneg %p135
    %p142 = scmp.eq.s32.totalorder %s10, 1
    %p143 = por %p141, %p142
    %p144 = scmp.ne.s32.totalorder %s136, %s139
    %p145 = scmp.eq.s32.totalorder %s10, 0
    %p146 = por %p144, %p145
    %p147 = scmp.ne.s32.totalorder %s136, %s139
    %p148 = scmp.eq.s32.totalorder %s15, 1
    %p149 = por %p147, %p148
    %p150 = scmp.ne.s32.totalorder %s139, %s140
    %p151 = scmp.eq.s32.totalorder %s15, 0
    %p152 = por %p150, %p151
    %p153 = scmp.ne.s32.totalorder %s139, %s140
    %p154 = scmp.eq.s32.totalorder %s16, 1
    %p155 = por %p153, %p154
    %p157 = scmp.ne.s32.totalorder %s140, %s156
    %p158 = scmp.eq.s32.totalorder %s16, 0
    %p159 = por %p157, %p158
    %p160 = scmp.le.s32.totalorder 1, %s10
    %p161 = scmp.lt.s32.totalorder %s10, 3
    %p162 = pnand %p160, %p161
    %p163 = pneg %p162
    // Predicated region
    $region9: #{tpu_custom_call.1} parent=5 // pred_check
      _
    $region10: #{tpu_custom_call.1} parent=5 // pred_check_branch
      %165 = sbr.rel (%p162) target = $region12
    $region11: #{tpu_custom_call.1} parent=5 // pred_region
      %s166 = ssub.s32 %s10, 1
      // Predicated region
      $region13: #{tpu_custom_call.1} parent=11 // pred_check
        %p167 = pneg %p103
      $region14: #{tpu_custom_call.1} parent=11 // pred_check_branch
        %169 = sbr.rel (%p167) target = $region16
      $region15: #{tpu_custom_call.1} parent=11 // pred_region
        _
      $region16: #{tpu_custom_call.1} parent=11 // pred_fallthru
        _
      // Predicated region
      $region17: #{tpu_custom_call.1} parent=11 // pred_check
        %p170 = pneg %p124
      $region18: #{tpu_custom_call.1} parent=11 // pred_check_branch
        %172 = sbr.rel (%p170) target = $region20
      $region19: #{tpu_custom_call.1} parent=11 // pred_region
        _
      $region20: #{tpu_custom_call.1} parent=11 // pred_fallthru
        _
    $region12: #{tpu_custom_call.1} parent=5 // pred_fallthru
      _
    %p173 = scmp.lt.s32.totalorder %s10, 2
    // Predicated region
    $region21: #{tpu_custom_call.1} parent=5 // pred_check
      %p174 = pneg %p173
    $region22: #{tpu_custom_call.1} parent=5 // pred_check_branch
      %176 = sbr.rel (%p174) target = $region24
    $region23: #{tpu_custom_call.1} parent=5 // pred_region
      // Predicated region
      $region25: #{tpu_custom_call.1} parent=23 // pred_check
        %p177 = pneg %p44
      $region26: #{tpu_custom_call.1} parent=23 // pred_check_branch
        %179 = sbr.rel (%p177) target = $region28
      $region27: #{tpu_custom_call.1} parent=23 // pred_region
        %s180 = smul.u32 8, %s18
        %s181 = ssub.s32 9, %s180
        %p182 = scmp.lt.s32.totalorder %s181, 8
        %s183 = scalar_select %p182, %s181, 8
        %s184 = smul.u32 128, %s183
        %s185 = smul.u32 %s184, 2
        %p186 = scmp.lt.s32.totalorder %s17, 1
        %s187 = scalar_select %p186, %s17, 1
        %p188 = scmp.lt.s32.totalorder %s180, 8
        %s189 = scalar_select %p188, %s180, 8
        %s190 = smul.addr %s189, 2
        %s191 = smul.addr %s187, 18
        %s192 = sadd.s32 %s190, %s191
        %s193 = smul.addr %s192, 8
        %s194 = scalar_lea.vmem %s0, %s193
        %s195 = smul.u32 8, %s18
        %s196 = ssub.s32 9, %s195
        %p197 = scmp.lt.s32.totalorder %s196, 8
        %s198 = scalar_select %p197, %s196, 8
        %s199 = smul.u32 128, %s198
        %s200 = smul.u32 %s199, 2
      $region28: #{tpu_custom_call.1} parent=23 // pred_fallthru
        _
      // Predicated region
      $region29: #{tpu_custom_call.1} parent=23 // pred_check
        %p201 = pneg %p76
      $region30: #{tpu_custom_call.1} parent=23 // pred_check_branch
        %203 = sbr.rel (%p201) target = $region32
      $region31: #{tpu_custom_call.1} parent=23 // pred_region
        %s204 = sadd.s32 %s18, 1
        %s205 = smul.u32 %s204, 8
        %p206 = scmp.lt.s32.totalorder %s17, 1
        %s207 = scalar_select %p206, %s17, 1
        %p208 = scmp.lt.s32.totalorder %s205, 8
        %s209 = scalar_select %p208, %s205, 8
        %s210 = smul.addr %s209, 2
        %s211 = smul.addr %s207, 18
        %s212 = sadd.s32 %s210, %s211
        %s213 = smul.addr %s212, 8
        %s214 = scalar_lea.vmem %s1, %s213
        %s215 = sadd.s32 %s18, 1
        %s216 = smul.u32 %s215, 8
      $region32: #{tpu_custom_call.1} parent=23 // pred_fallthru
        _
    $region24: #{tpu_custom_call.1} parent=5 // pred_fallthru
      _
    %p217 = scmp.le.s32.totalorder 1, %s10
    %p218 = scmp.lt.s32.totalorder %s10, 3
    %p219 = pnand %p217, %p218
    %p220 = pneg %p219
    // Predicated region
    $region33: #{tpu_custom_call.1} parent=5 // pred_check
      _
    $region34: #{tpu_custom_call.1} parent=5 // pred_check_branch
      %222 = sbr.rel (%p219) target = $region36
    $region35: #{tpu_custom_call.1} parent=5 // pred_region
      %s223 = ssub.s32 %s10, 1
      %s224 = smul.u32 8, %s20
      %s225 = ssub.s32 9, %s224
      %p226 = scmp.lt.s32.totalorder %s225, 8
      %s227 = scalar_select %p226, %s225, 8
      %s228 = smul.u32 128, %s227
      %s229 = smul.u32 %s228, 2
      %p230 = scmp.lt.s32.totalorder %s19, 1
      %s231 = scalar_select %p230, %s19, 1
      %p232 = scmp.lt.s32.totalorder %s224, 8
      %s233 = scalar_select %p232, %s224, 8
      %s234 = smul.addr %s233, 2
      %s235 = smul.addr %s231, 18
      %s236 = sadd.s32 %s234, %s235
      %s237 = smul.addr %s236, 8
      %s238 = scalar_lea.vmem %s0, %s237
      %p239 = pneg %p50
      %p240 = pneg %p47
      %s241 = sadd.s32 %s20, 1
      %s242 = smul.u32 %s241, 8
      %p243 = scmp.lt.s32.totalorder %s19, 1
      %s244 = scalar_select %p243, %s19, 1
      %p245 = scmp.lt.s32.totalorder %s242, 8
      %s246 = scalar_select %p245, %s242, 8
      %s247 = smul.addr %s246, 2
      %s248 = smul.addr %s244, 18
      %s249 = sadd.s32 %s247, %s248
      %s250 = smul.addr %s249, 8
      %s251 = scalar_lea.vmem %s1, %s250
      %p252 = pneg %p82
      %p253 = pneg %p79
      %p254 = pneg %p103
      %p255 = pneg %p100
      %p256 = pneg %p124
      %p257 = pneg %p121
      %p258 = pneg %p152
      %p259 = pneg %p149
      %s260 = smul.u32 8, %s20
      %p261 = scmp.lt.s32.totalorder %s19, 1
      %s262 = scalar_select %p261, %s19, 1
      %p263 = scmp.lt.s32.totalorder %s260, 7
      %s264 = scalar_select %p263, %s260, 7
      %s265 = smul.addr %s262, 8
      %s266 = sadd.s32 %s264, %s265
      %s267 = smul.addr %s266, 8
      %s268 = scalar_lea.vmem %s4, %s267
      %s269 = smul.u32 8, %s20
      %s270 = ssub.s32 9, %s269
      %p271 = scmp.lt.s32.totalorder %s270, 8
      %s272 = scalar_select %p271, %s270, 8
      %s273 = smul.u32 128, %s272
      %s274 = smul.u32 %s273, 2
      %p275 = scmp.lt.s32.totalorder %s19, 1
      %s276 = scalar_select %p275, %s19, 1
      %p277 = scmp.lt.s32.totalorder %s269, 8
      %s278 = scalar_select %p277, %s269, 8
      %s279 = smul.addr %s278, 2
      %s280 = smul.addr %s276, 18
      %s281 = sadd.s32 %s279, %s280
      %s282 = smul.addr %s281, 8
      %s283 = scalar_lea.vmem %s0, %s282
      %s284 = smul.u32 8, %s20
      %s285 = ssub.s32 9, %s284
      %p286 = scmp.lt.s32.totalorder %s285, 8
      %s287 = scalar_select %p286, %s285, 8
      %s288 = smul.u32 128, %s287
      %s289 = smul.u32 %s288, 2
      %s290 = sadd.s32 %s20, 1
      %s291 = smul.u32 %s290, 8
      %p292 = scmp.lt.s32.totalorder %s19, 1
      %s293 = scalar_select %p292, %s19, 1
      %p294 = scmp.lt.s32.totalorder %s291, 8
      %s295 = scalar_select %p294, %s291, 8
      %s296 = smul.addr %s295, 2
      %s297 = smul.addr %s293, 18
      %s298 = sadd.s32 %s296, %s297
      %s299 = smul.addr %s298, 8
      %s300 = scalar_lea.vmem %s1, %s299
      %s301 = sadd.s32 %s20, 1
      %s302 = smul.u32 %s301, 8
      %s303 = smul.u32 8, %s20
      %p304 = scmp.lt.s32.totalorder %s19, 1
      %s305 = scalar_select %p304, %s19, 1
      %p306 = scmp.lt.s32.totalorder %s303, 7
      %s307 = scalar_select %p306, %s303, 7
      %s308 = smul.addr %s305, 8
      %s309 = sadd.s32 %s307, %s308
      %s310 = smul.addr %s309, 8
      %s311 = scalar_lea.vmem %s4, %s310
      %s312 = smul.u32 8, %s20
      %v313 = vld [vmem:[%s283] sm:$0xff]
      %v314 = vld [vmem:[%s283 + $0x8] sm:$0x1]
      %v315 = vld [vmem:[%s283 + $0x10] sm:$0xff]
      %v316 = vld [vmem:[%s283 + $0x18] sm:$0x1]
      %v317 = vld [vmem:[%s283 + $0x20] sm:$0xff]
      %v318 = vld [vmem:[%s283 + $0x28] sm:$0x1]
      %v319 = vld [vmem:[%s283 + $0x30] sm:$0xff]
      %v320 = vld [vmem:[%s283 + $0x38] sm:$0x1]
      %v321 = vld [vmem:[%s283 + $0x40] sm:$0xff]
      %v322 = vld [vmem:[%s283 + $0x48] sm:$0x1]
      %v323 = vld [vmem:[%s283 + $0x50] sm:$0xff]
      %v324 = vld [vmem:[%s283 + $0x58] sm:$0x1]
      %v325 = vld [vmem:[%s283 + $0x60] sm:$0xff]
      %v326 = vld [vmem:[%s283 + $0x68] sm:$0x1]
      %v327 = vld [vmem:[%s283 + $0x70] sm:$0xff]
      %v328 = vld [vmem:[%s283 + $0x78] sm:$0x1]
      %v329 = vld [vmem:[%s300] sm:$0xff]
      %v330 = vld [vmem:[%s300 + $0x8] sm:$0x1]
      %vm347 = vcmask 1046528
      %v348 = vrot.slane %v313, 1
      %v349 = vrot.slane %v314, 1
      %v350 = vsel %vm347, %v348, %v349
      %v351 = vrot.slane %v315, 1
      %v352 = vrot.slane %v316, 1
      %v353 = vsel %vm347, %v351, %v352
      %v354 = vrot.slane %v317, 1
      %v355 = vrot.slane %v318, 1
      %v356 = vsel %vm347, %v354, %v355
      %v357 = vrot.slane %v319, 1
      %v358 = vrot.slane %v320, 1
      %v359 = vsel %vm347, %v357, %v358
      %v360 = vrot.slane %v321, 1
      %v361 = vrot.slane %v322, 1
      %v362 = vsel %vm347, %v360, %v361
      %v363 = vrot.slane %v323, 1
      %v364 = vrot.slane %v324, 1
      %v365 = vsel %vm347, %v363, %v364
      %v366 = vrot.slane %v325, 1
      %v367 = vrot.slane %v326, 1
      %v368 = vsel %vm347, %v366, %v367
      %v369 = vrot.slane %v327, 1
      %v370 = vrot.slane %v328, 1
      %v371 = vsel %vm347, %v369, %v370
      %v374 = vrot.slane %v329, 1
      %v375 = vrot.slane %v330, 1
      %v376 = vsel %vm347, %v374, %v375
      %377 = vrot.lane.b32.xlu0 %v350, 16
      %v378 = vpop.permute.xlu0 %377
      %379 = vrot.lane.b32.xlu0 %v353, 16
      %v380 = vpop.permute.xlu0 %379
      %381 = vrot.lane.b32.xlu0 %v356, 16
      %v382 = vpop.permute.xlu0 %381
      %383 = vrot.lane.b32.xlu0 %v359, 16
      %v384 = vpop.permute.xlu0 %383
      %385 = vrot.lane.b32.xlu0 %v362, 16
      %v386 = vpop.permute.xlu0 %385
      %387 = vrot.lane.b32.xlu0 %v365, 16
      %v388 = vpop.permute.xlu0 %387
      %389 = vrot.lane.b32.xlu0 %v368, 16
      %v390 = vpop.permute.xlu0 %389
      %391 = vrot.lane.b32.xlu0 %v371, 16
      %v392 = vpop.permute.xlu0 %391
      %401 = vrot.lane.b32.xlu0 %v315, 32
      %v402 = vpop.permute.xlu0 %401
      %403 = vrot.lane.b32.xlu0 %v317, 32
      %v404 = vpop.permute.xlu0 %403
      %405 = vrot.lane.b32.xlu0 %v319, 32
      %v406 = vpop.permute.xlu0 %405
      %407 = vrot.lane.b32.xlu0 %v321, 32
      %v408 = vpop.permute.xlu0 %407
      %409 = vrot.lane.b32.xlu0 %v323, 32
      %v410 = vpop.permute.xlu0 %409
      %411 = vrot.lane.b32.xlu0 %v325, 32
      %v412 = vpop.permute.xlu0 %411
      %413 = vrot.lane.b32.xlu0 %v327, 32
      %v414 = vpop.permute.xlu0 %413
      %415 = vrot.lane.b32.xlu0 %v329, 32
      %v416 = vpop.permute.xlu0 %415
      %425 = vrot.lane.b32.xlu0 %v353, 48
      %v426 = vpop.permute.xlu0 %425
      %427 = vrot.lane.b32.xlu0 %v356, 48
      %v428 = vpop.permute.xlu0 %427
      %429 = vrot.lane.b32.xlu0 %v359, 48
      %v430 = vpop.permute.xlu0 %429
      %431 = vrot.lane.b32.xlu0 %v362, 48
      %v432 = vpop.permute.xlu0 %431
      %433 = vrot.lane.b32.xlu0 %v365, 48
      %v434 = vpop.permute.xlu0 %433
      %435 = vrot.lane.b32.xlu0 %v368, 48
      %v436 = vpop.permute.xlu0 %435
      %437 = vrot.lane.b32.xlu0 %v371, 48
      %v438 = vpop.permute.xlu0 %437
      %439 = vrot.lane.b32.xlu0 %v376, 48
      %v440 = vpop.permute.xlu0 %439
      %vm449 = vcmask 130048
      %v450 = vsel %vm449, %v313, %v378
      %v451 = vsel %vm449, %v315, %v380
      %v452 = vsel %vm449, %v317, %v382
      %v453 = vsel %vm449, %v319, %v384
      %v454 = vsel %vm449, %v321, %v386
      %v455 = vsel %vm449, %v323, %v388
      %v456 = vsel %vm449, %v325, %v390
      %v457 = vsel %vm449, %v327, %v392
      %vm458 = vcmask 261120
      %v459 = vsel %vm458, %v450, %v402
      %v460 = vsel %vm458, %v451, %v404
      %v461 = vsel %vm458, %v452, %v406
      %v462 = vsel %vm458, %v453, %v408
      %v463 = vsel %vm458, %v454, %v410
      %v464 = vsel %vm458, %v455, %v412
      %v465 = vsel %vm458, %v456, %v414
      %v466 = vsel %vm458, %v457, %v416
      %vm467 = vcmask 392192
      %v468 = vsel %vm467, %v459, %v426
      %v469 = vsel %vm467, %v460, %v428
      %v470 = vsel %vm467, %v461, %v430
      %v471 = vsel %vm467, %v462, %v432
      %v472 = vsel %vm467, %v463, %v434
      %v473 = vsel %vm467, %v464, %v436
      %v474 = vsel %vm467, %v465, %v438
      %v475 = vsel %vm467, %v466, %v440
      %v476 = vld [vmem:[%s2] sm:$0xff]
      %v477 = vld [vmem:[%s2 + $0x8] sm:$0xff]
      %v478 = vld [vmem:[%s2 + $0x10] sm:$0xff]
      %v479 = vld [vmem:[%s2 + $0x18] sm:$0xff]
      %v480 = vld [vmem:[%s2 + $0x20] sm:$0xff]
      %v481 = vld [vmem:[%s2 + $0x28] sm:$0xff]
      %v482 = vld [vmem:[%s2 + $0x30] sm:$0xff]
      %v483 = vld [vmem:[%s2 + $0x38] sm:$0xff]
      %v484 = vld [vmem:[%s3] sm:$0x1]
      %v486 = vlaneseq
      %v487 = vshrl.u32 %v486, 7
      %v488 = vsub.s32 0, %v487
      %v489 = vrot.slane %v484, %v488
      %vm491 = vcmask 523264
      %v493 = vsel %vm491, %v468, 0
      %v496 = vsel %vm491, %v469, 0
      %v499 = vsel %vm491, %v470, 0
      %v502 = vsel %vm491, %v471, 0
      %v505 = vsel %vm491, %v472, 0
      %v508 = vsel %vm491, %v473, 0
      %v511 = vsel %vm491, %v474, 0
      %v514 = vsel %vm491, %v475, 0
      %516 = vmatprep.subr.mxu0 0.0
      %517 = vmatpush1.msra.mxu0 %v476
      %518 = vmatprep.subr.mxu0 0.0
      %519 = vmatpush1.msra.mxu0 %v477
      %520 = vmatprep.subr.mxu0 0.0
      %521 = vmatpush1.msra.mxu0 %v478
      %522 = vmatprep.subr.mxu0 0.0
      %523 = vmatpush1.msra.mxu0 %v479
      %524 = vmatprep.subr.mxu0 0.0
      %525 = vmatpush1.msra.mxu0 %v480
      %526 = vmatprep.subr.mxu0 0.0
      %527 = vmatpush1.msra.mxu0 %v481
      %528 = vmatprep.subr.mxu0 0.0
      %529 = vmatpush1.msra.mxu0 %v482
      %530 = vmatprep.subr.mxu0 0.0
      %531 = vmatpush1.msra.mxu0 %v483
      %532 = vmatprep.subr.mxu0 0.0
      %533 = vmatpush1.msra.mxu0 0.0
      %534 = vmatprep.subr.mxu0 0.0
      %535 = vmatpush1.msra.mxu0 0.0
      %536 = vmatprep.subr.mxu0 0.0
      %537 = vmatpush1.msra.mxu0 0.0
      %538 = vmatprep.subr.mxu0 0.0
      %539 = vmatpush1.msra.mxu0 0.0
      %540 = vmatprep.subr.mxu0 0.0
      %541 = vmatpush1.msra.mxu0 0.0
      %542 = vmatprep.subr.mxu0 0.0
      %543 = vmatpush1.msra.mxu0 0.0
      %544 = vmatprep.subr.mxu0 0.0
      %545 = vmatpush1.msra.mxu0 0.0
      %546 = vmatprep.subr.mxu0 0.0
      %547 = vmatpush1.msra.mxu0 0.0
      %548 = vmatprep.subr.mxu0 0.0
      %549 = vmatpush1.msra.mxu0 0.0
      %550 = vmatprep.subr.mxu0 0.0
      %551 = vmatpush1.msra.mxu0 0.0
      %552 = vmatprep.subr.mxu0 0.0
      %553 = vmatpush1.msra.mxu0 0.0
      %554 = vmatprep.subr.mxu0 0.0
      %555 = vmatpush1.msra.mxu0 0.0
      %556 = vmatprep.subr.mxu0 0.0
      %557 = vmatpush1.msra.mxu0 0.0
      %558 = vmatprep.subr.mxu0 0.0
      %559 = vmatpush1.msra.mxu0 0.0
      %560 = vmatprep.subr.mxu0 0.0
      %561 = vmatpush1.msra.mxu0 0.0
      %562 = vmatprep.subr.mxu0 0.0
      %563 = vmatpush1.msra.mxu0 0.0
      %564 = vmatprep.subr.mxu0 0.0
      %565 = vmatpush1.msra.mxu0 0.0
      %566 = vmatprep.subr.mxu0 0.0
      %567 = vmatpush1.msra.mxu0 0.0
      %568 = vmatprep.subr.mxu0 0.0
      %569 = vmatpush1.msra.mxu0 0.0
      %570 = vmatprep.subr.mxu0 0.0
      %571 = vmatpush1.msra.mxu0 0.0
      %572 = vmatprep.subr.mxu0 0.0
      %573 = vmatpush1.msra.mxu0 0.0
      %574 = vmatprep.subr.mxu0 0.0
      %575 = vmatpush1.msra.mxu0 0.0
      %576 = vmatprep.subr.mxu0 0.0
      %577 = vmatpush1.msra.mxu0 0.0
      %578 = vmatprep.subr.mxu0 0.0
      %579 = vmatpush1.msra.mxu0 0.0
      %580 = vmatprep.mubr.f32.mxu0 0.0
      %581 = vmatmul.mubr.f32.gmra.mrb[0].mxu0 %v493
      %v582 = vpop.f32.mrb[0].mxu0
      %v583 = vadd.f32 %v489, %v582
      %v584 = vpop.f32.mrb[0].mxu0
      %585 = vmatprep.mubr.f32.mxu0 0.0
      %586 = vmatmul.mubr.f32.gmra.mrb[0].mxu0 %v496
      %v587 = vpop.f32.mrb[0].mxu0
      %v588 = vadd.f32 %v489, %v587
      %v589 = vpop.f32.mrb[0].mxu0
      %590 = vmatprep.mubr.f32.mxu0 0.0
      %591 = vmatmul.mubr.f32.gmra.mrb[0].mxu0 %v499
      %v592 = vpop.f32.mrb[0].mxu0
      %v593 = vadd.f32 %v489, %v592
      %v594 = vpop.f32.mrb[0].mxu0
      %595 = vmatprep.mubr.f32.mxu0 0.0
      %596 = vmatmul.mubr.f32.gmra.mrb[0].mxu0 %v502
      %v597 = vpop.f32.mrb[0].mxu0
      %v598 = vadd.f32 %v489, %v597
      %v599 = vpop.f32.mrb[0].mxu0
      %600 = vmatprep.mubr.f32.mxu0 0.0
      %601 = vmatmul.mubr.f32.gmra.mrb[0].mxu0 %v505
      %v602 = vpop.f32.mrb[0].mxu0
      %v603 = vadd.f32 %v489, %v602
      %v604 = vpop.f32.mrb[0].mxu0
      %605 = vmatprep.mubr.f32.mxu0 0.0
      %606 = vmatmul.mubr.f32.gmra.mrb[0].mxu0 %v508
      %v607 = vpop.f32.mrb[0].mxu0
      %v608 = vadd.f32 %v489, %v607
      %v609 = vpop.f32.mrb[0].mxu0
      %610 = vmatprep.mubr.f32.mxu0 0.0
      %611 = vmatmul.mubr.f32.gmra.mrb[0].mxu0 %v511
      %v612 = vpop.f32.mrb[0].mxu0
      %v613 = vadd.f32 %v489, %v612
      %v614 = vpop.f32.mrb[0].mxu0
      %615 = vmatprep.mubr.f32.mxu0 0.0
      %616 = vmatmul.mubr.f32.gmra.mrb[0].mxu0 %v514
      %v617 = vpop.f32.mrb[0].mxu0
      %v618 = vadd.f32 %v489, %v617
      %v619 = vpop.f32.mrb[0].mxu0
      %620 = vdwg.mxu0
      %vm621 = vcmask 31744
      %622 = vst.msk [vmem:[%s311] sm:$0xff] %vm621, %v583
      %623 = vst.msk [vmem:[%s311 + $0x8] sm:$0xff] %vm621, %v588
      %624 = vst.msk [vmem:[%s311 + $0x10] sm:$0xff] %vm621, %v593
      %625 = vst.msk [vmem:[%s311 + $0x18] sm:$0xff] %vm621, %v598
      %626 = vst.msk [vmem:[%s311 + $0x20] sm:$0xff] %vm621, %v603
      %627 = vst.msk [vmem:[%s311 + $0x28] sm:$0xff] %vm621, %v608
      %628 = vst.msk [vmem:[%s311 + $0x30] sm:$0xff] %vm621, %v613
      %629 = vst.msk [vmem:[%s311 + $0x38] sm:$0xff] %vm621, %v618
      %s630 = smul.u32 8, %s20
      %p631 = scmp.lt.s32.totalorder %s19, 1
      %s632 = scalar_select %p631, %s19, 1
      %p633 = scmp.lt.s32.totalorder %s630, 7
      %s634 = scalar_select %p633, %s630, 7
      %s635 = smul.addr %s632, 8
      %s636 = sadd.s32 %s634, %s635
      %s637 = smul.addr %s636, 8
      %s638 = scalar_lea.vmem %s4, %s637
      // Predicated region
      $region37: #{tpu_custom_call.1} parent=35 // pred_check
        %p639 = pneg %p149
      $region38: #{tpu_custom_call.1} parent=35 // pred_check_branch
        %641 = sbr.rel (%p639) target = $region40
      $region39: #{tpu_custom_call.1} parent=35 // pred_region
        %s642 = smul.u32 8, %s20
      $region40: #{tpu_custom_call.1} parent=35 // pred_fallthru
        _
    $region36: #{tpu_custom_call.1} parent=5 // pred_fallthru
      _
    %p643 = scmp.le.s32.totalorder 2, %s10
    // Predicated region
    $region41: #{tpu_custom_call.1} parent=5 // pred_check
      %p644 = pneg %p643
    $region42: #{tpu_custom_call.1} parent=5 // pred_check_branch
      %646 = sbr.rel (%p644) target = $region44
    $region43: #{tpu_custom_call.1} parent=5 // pred_region
      %s647 = ssub.s32 %s10, 2
      // Predicated region
      $region45: #{tpu_custom_call.1} parent=43 // pred_check
        %p648 = pneg %p155
      $region46: #{tpu_custom_call.1} parent=43 // pred_check_branch
        %650 = sbr.rel (%p648) target = $region48
      $region47: #{tpu_custom_call.1} parent=43 // pred_region
        %s651 = smul.u32 8, %s22
        %p652 = scmp.lt.s32.totalorder %s21, 1
        %s653 = scalar_select %p652, %s21, 1
        %p654 = scmp.lt.s32.totalorder %s651, 7
        %s655 = scalar_select %p654, %s651, 7
        %s656 = smul.addr %s653, 8
        %s657 = sadd.s32 %s655, %s656
        %s658 = smul.addr %s657, 8
        %s659 = scalar_lea.vmem %s4, %s658
      $region48: #{tpu_custom_call.1} parent=43 // pred_fallthru
        _
    $region44: #{tpu_custom_call.1} parent=5 // pred_fallthru
      _
  $region6: #{tpu_custom_call.1} parent=0 // loop_footer
    %s14 = sadd.s32 1, %s10
  $region7: #{tpu_custom_call.1} parent=0 // loop_footer_branch
    %9 = sbr.rel target = $region3
  $region8: #{tpu_custom_call.1} parent=0 // loop_exit
    _

</llo_original>
